<compile_context>
chip_gen: v7x
topology: tpu7x:2x2x1
jax: 0.10.0
libtpu: 0.0.40
codegen_flags: <defaults>
</compile_context>

<pallas_src>
import jax
import jax.numpy as jnp
from jax import lax
from jax.experimental import pallas as pl
from jax.experimental.pallas import tpu as pltpu


def _round_up(x, m):
    return (x + m - 1) // m * m


def _make_kernel(nb, T, shifts):
    """Kernel over one batch chunk of `nb` images.

    wg_ref: (4, Cout, Cg)   grouped tap weights (resident across the grid)
    b_ref : (Cout, 1)       bias
    p_ref : (nb, Cg, L_pad) parity-plane data, flat spatial on lanes
    o_ref : (nb, Cout, T)   output, lane-dense (T multiple of 128)
    """
    def kernel(wg_ref, b_ref, p_ref, o_ref):
        for j in range(nb):  # static unroll (nb is small)
            acc = jnp.dot(wg_ref[0], p_ref[j, :, 0:T],
                          preferred_element_type=jnp.float32)
            for g in range(1, 4):
                s = shifts[g]
                acc = acc + jnp.dot(wg_ref[g], p_ref[j, :, s:s + T],
                                    preferred_element_type=jnp.float32)
            acc = acc + b_ref[...]
            # LeakyReLU(0.2) fused epilogue (VPU filler under the DMA).
            o_ref[j] = jnp.where(acc >= 0.0, acc, 0.2 * acc).astype(o_ref.dtype)
    return kernel


def down_forward(x_nchw, weight, bias, *, stride=2, padding=1):
    """Conv2d(k=3, stride=2, pad=1, bias) + LeakyReLU(0.2).

    x_nchw : (N, Cin, H, W)    float32
    weight : (Cout, Cin, 3, 3) float32  (PyTorch layout)
    bias   : (Cout,)           float32
    returns: (N, Cout, Ho, Wo) float32
    """
    N, Cin, H, W = x_nchw.shape
    Cout, _, KH, KW = weight.shape
    assert (KH, KW) == (3, 3) and stride == 2 and padding == 1
    Ho = (H + 2 * padding - KH) // stride + 1
    Wo = (W + 2 * padding - KW) // stride + 1

    Hf, Wf = Ho + 1, Wo + 1                    # parity-plane extents (with halo)
    T = _round_up(Ho * Wf, 128)                # output lanes per image (lane-dense)
    L_pad = _round_up(T + Wf + 1, 128)         # plane flat length incl. shift slack
    Cg = max(_round_up(4 * Cin, 8), 8)         # grouped K dim, sublane aligned
    f32 = jnp.float32

    # ---- build parity planes (the only wrapper-side data restructure) -------
    x = x_nchw.astype(f32)
    xp = jnp.pad(x, ((0, 0), (0, 0), (padding, padding), (padding, padding)))
    planes = []
    for a in range(2):
        for b in range(2):
            p = xp[:, :, a::2, b::2]                      # (N, Cin, ha, wb)
            p = jnp.pad(p, ((0, 0), (0, 0),
                            (0, Hf - p.shape[2]), (0, Wf - p.shape[3])))
            planes.append(p.reshape(N, Cin, Hf * Wf))
    P = jnp.concatenate(planes, axis=1)                   # (N, 4*Cin, Hf*Wf)
    P = jnp.pad(P, ((0, 0), (0, Cg - 4 * Cin), (0, L_pad - Hf * Wf)))

    # ---- group the 9 conv taps by their flat shift {0, 1, Wf, Wf+1} ---------
    w = weight.astype(f32)
    Wg = jnp.zeros((4, Cout, Cg), f32)
    for kh in range(KH):
        for kw in range(KW):
            g = 2 * (kh // 2) + (kw // 2)                 # shift group
            pi = 2 * (kh % 2) + (kw % 2)                  # parity plane index
            Wg = Wg.at[g, :, pi * Cin:(pi + 1) * Cin].set(w[:, :, kh, kw])
    b2d = bias.astype(f32).reshape(Cout, 1)
    shifts = (0, 1, Wf, Wf + 1)

    # ---- batch chunking: sizeable per-step DMA, >=2 steps when N >= 2 -------
    per_img_bytes = (Cg * L_pad + Cout * T) * 4
    target_bytes = 4 << 20
    nb = 1
    for d in range(1, min(N, 8) + 1):
        if N % d:
            continue
        if d * per_img_bytes > target_bytes:
            break
        if N // d >= 2 or N == 1:
            nb = d
    n_steps = N // nb

    est = 2 * nb * per_img_bytes + 4 * Cout * Cg * 4 + (1 << 20)
    vmem_limit = int(min(max(32 << 20, est), 100 << 20))

    kernel = _make_kernel(nb, T, shifts)
    out_flat = pl.pallas_call(
        kernel,
        out_shape=jax.ShapeDtypeStruct((N, Cout, T), f32),
        grid=(n_steps,),
        in_specs=[
            pl.BlockSpec((4, Cout, Cg), lambda n: (0, 0, 0)),     # grouped weights
            pl.BlockSpec((Cout, 1), lambda n: (0, 0)),            # bias
            pl.BlockSpec((nb, Cg, L_pad), lambda n: (n, 0, 0)),   # parity planes
        ],
        out_specs=pl.BlockSpec((nb, Cout, T), lambda n: (n, 0, 0)),
        compiler_params=pltpu.CompilerParams(
            dimension_semantics=("parallel",),      # batch steps shardable (v7x)
            vmem_limit_bytes=vmem_limit,
        ),
    )(Wg, b2d, P)

    # Output is already N, Cout major — just strip the Wf-stride garbage column
    # and the lane padding (no transpose needed).
    out = out_flat[:, :, :Ho * Wf].reshape(N, Cout, Ho, Wf)[:, :, :, :Wo]
    return out


if __name__ == "__main__":
    # Small shapes consistent with the module: batch=2, Cin=4, H=W=16, Cout=8.
    N, Cin, H, W = 2, 4, 16, 16
    Cout = 8

    key = jax.random.PRNGKey(0)
    kx, kw, kb = jax.random.split(key, 3)
    x = jax.random.normal(kx, (N, Cin, H, W), dtype=jnp.float32)
    fan_in = Cin * 3 * 3
    weight = jax.random.normal(kw, (Cout, Cin, 3, 3), dtype=jnp.float32) / jnp.sqrt(fan_in)
    bias = jax.random.normal(kb, (Cout,), dtype=jnp.float32) * 0.1

    y = jax.jit(down_forward)(x, weight, bias)
    y = jax.block_until_ready(y)

    # Reference check against XLA conv (same semantics as PyTorch Conv2d NCHW).
    ref = lax.conv_general_dilated(
        x, weight, window_strides=(2, 2), padding=((1, 1), (1, 1)),
        dimension_numbers=("NCHW", "OIHW", "NCHW"),
    ) + bias.reshape(1, Cout, 1, 1)
    ref = jnp.where(ref >= 0, ref, 0.2 * ref)
    assert y.shape == (N, Cout, H // 2, W // 2), y.shape
    max_err = float(jnp.max(jnp.abs(y - ref)))
    assert jnp.allclose(y, ref, rtol=1e-3, atol=1e-3), max_err

    print("KERNEL_OK")
</pallas_src>

<mosaic_0001>
module attributes {stable_mosaic.version = 11 : i64} {
  func.func @kernel(%arg0: i32, %arg1: memref<4x8x16xf32, #tpu.memory_space<vmem>>, %arg2: memref<8x1xf32, #tpu.memory_space<vmem>>, %arg3: memref<1x16x256xf32, #tpu.memory_space<vmem>>, %arg4: memref<1x8x128xf32, #tpu.memory_space<vmem>>) attributes {dimension_semantics = [#tpu.dimension_semantics<parallel>], iteration_bounds = array<i64: 2>, scalar_prefetch = 0 : i64, scratch_operands = 0 : i64, tpu.core_type = #tpu.core_type<tc>, window_params = [{pipeline_mode = #tpu.pipeline_mode<synchronous>, transform_indices = @transform_0, window_bounds = array<i64: 4, 8, 16>}, {pipeline_mode = #tpu.pipeline_mode<synchronous>, transform_indices = @transform_1, window_bounds = array<i64: 8, 1>}, {transform_indices = @transform_2, window_bounds = array<i64: 1, 16, 256>}, {transform_indices = @transform_3, window_bounds = array<i64: 1, 8, 128>}]} {
    %c0 = arith.constant 0 : index
    %c0_0 = arith.constant 0 : index
    %c0_1 = arith.constant 0 : index
    %0 = vector.load %arg1[%c0, %c0_0, %c0_1] : memref<4x8x16xf32, #tpu.memory_space<vmem>>, vector<1x8x16xf32>
    %1 = vector.shape_cast %0 : vector<1x8x16xf32> to vector<8x16xf32>
    %c0_2 = arith.constant 0 : index
    %c0_3 = arith.constant 0 : index
    %c0_4 = arith.constant 0 : index
    %2 = vector.load %arg3[%c0_2, %c0_3, %c0_4] : memref<1x16x256xf32, #tpu.memory_space<vmem>>, vector<1x16x128xf32>
    %3 = vector.shape_cast %2 : vector<1x16x128xf32> to vector<16x128xf32>
    %cst = arith.constant dense<0.000000e+00> : vector<8x128xf32>
    %4 = tpu.matmul %1, %3, %cst {dimension_numbers = #tpu.dot_dimension_numbers<[1], [0], [0], [1], [0, 0, 1, 1], [], []>} : vector<8x16xf32>, vector<16x128xf32>, vector<8x128xf32> -> vector<8x128xf32>
    %c1 = arith.constant 1 : index
    %c0_5 = arith.constant 0 : index
    %c0_6 = arith.constant 0 : index
    %5 = vector.load %arg1[%c1, %c0_5, %c0_6] : memref<4x8x16xf32, #tpu.memory_space<vmem>>, vector<1x8x16xf32>
    %6 = vector.shape_cast %5 : vector<1x8x16xf32> to vector<8x16xf32>
    %c0_7 = arith.constant 0 : index
    %c0_8 = arith.constant 0 : index
    %c1_9 = arith.constant 1 : index
    %7 = vector.load %arg3[%c0_7, %c0_8, %c1_9] : memref<1x16x256xf32, #tpu.memory_space<vmem>>, vector<1x16x128xf32>
    %8 = vector.shape_cast %7 : vector<1x16x128xf32> to vector<16x128xf32>
    %cst_10 = arith.constant dense<0.000000e+00> : vector<8x128xf32>
    %9 = tpu.matmul %6, %8, %cst_10 {dimension_numbers = #tpu.dot_dimension_numbers<[1], [0], [0], [1], [0, 0, 1, 1], [], []>} : vector<8x16xf32>, vector<16x128xf32>, vector<8x128xf32> -> vector<8x128xf32>
    %10 = arith.addf %4, %9 : vector<8x128xf32>
    %c2 = arith.constant 2 : index
    %c0_11 = arith.constant 0 : index
    %c0_12 = arith.constant 0 : index
    %11 = vector.load %arg1[%c2, %c0_11, %c0_12] : memref<4x8x16xf32, #tpu.memory_space<vmem>>, vector<1x8x16xf32>
    %12 = vector.shape_cast %11 : vector<1x8x16xf32> to vector<8x16xf32>
    %c0_13 = arith.constant 0 : index
    %c0_14 = arith.constant 0 : index
    %c9 = arith.constant 9 : index
    %13 = vector.load %arg3[%c0_13, %c0_14, %c9] : memref<1x16x256xf32, #tpu.memory_space<vmem>>, vector<1x16x128xf32>
    %14 = vector.shape_cast %13 : vector<1x16x128xf32> to vector<16x128xf32>
    %cst_15 = arith.constant dense<0.000000e+00> : vector<8x128xf32>
    %15 = tpu.matmul %12, %14, %cst_15 {dimension_numbers = #tpu.dot_dimension_numbers<[1], [0], [0], [1], [0, 0, 1, 1], [], []>} : vector<8x16xf32>, vector<16x128xf32>, vector<8x128xf32> -> vector<8x128xf32>
    %16 = arith.addf %10, %15 : vector<8x128xf32>
    %c3 = arith.constant 3 : index
    %c0_16 = arith.constant 0 : index
    %c0_17 = arith.constant 0 : index
    %17 = vector.load %arg1[%c3, %c0_16, %c0_17] : memref<4x8x16xf32, #tpu.memory_space<vmem>>, vector<1x8x16xf32>
    %18 = vector.shape_cast %17 : vector<1x8x16xf32> to vector<8x16xf32>
    %c0_18 = arith.constant 0 : index
    %c0_19 = arith.constant 0 : index
    %c10 = arith.constant 10 : index
    %19 = vector.load %arg3[%c0_18, %c0_19, %c10] : memref<1x16x256xf32, #tpu.memory_space<vmem>>, vector<1x16x128xf32>
    %20 = vector.shape_cast %19 : vector<1x16x128xf32> to vector<16x128xf32>
    %cst_20 = arith.constant dense<0.000000e+00> : vector<8x128xf32>
    %21 = tpu.matmul %18, %20, %cst_20 {dimension_numbers = #tpu.dot_dimension_numbers<[1], [0], [0], [1], [0, 0, 1, 1], [], []>} : vector<8x16xf32>, vector<16x128xf32>, vector<8x128xf32> -> vector<8x128xf32>
    %22 = arith.addf %16, %21 : vector<8x128xf32>
    %c0_21 = arith.constant 0 : index
    %c0_22 = arith.constant 0 : index
    %23 = vector.load %arg2[%c0_21, %c0_22] : memref<8x1xf32, #tpu.memory_space<vmem>>, vector<8x1xf32>
    %24 = vector.broadcast %23 : vector<8x1xf32> to vector<8x128xf32>
    %25 = arith.addf %22, %24 : vector<8x128xf32>
    %cst_23 = arith.constant 0.000000e+00 : f32
    %26 = vector.broadcast %cst_23 : f32 to vector<8x128xf32>
    %27 = arith.cmpf oge, %25, %26 : vector<8x128xf32>
    %cst_24 = arith.constant 2.000000e-01 : f32
    %28 = vector.broadcast %cst_24 : f32 to vector<8x128xf32>
    %29 = arith.mulf %28, %25 : vector<8x128xf32>
    %30 = arith.select %27, %25, %29 : vector<8x128xi1>, vector<8x128xf32>
    %c0_25 = arith.constant 0 : index
    %c0_26 = arith.constant 0 : index
    %c0_27 = arith.constant 0 : index
    %31 = vector.load %arg4[%c0_25, %c0_26, %c0_27] : memref<1x8x128xf32, #tpu.memory_space<vmem>>, vector<1x8x128xf32>
    %32 = vector.shape_cast %31 : vector<1x8x128xf32> to vector<8x128xf32>
    %33 = vector.shape_cast %30 : vector<8x128xf32> to vector<1x8x128xf32>
    tpu.vector_store %arg4[%c0_25, %c0_26, %c0_27], %33 {strides = array<i32>} : memref<1x8x128xf32, #tpu.memory_space<vmem>>, vector<1x8x128xf32>,
    return
  }
  func.func @transform_0(%arg0: i32) -> (i32, i32, i32) {
    %c0_i32 = arith.constant 0 : i32
    %c0_i32_0 = arith.constant 0 : i32
    %c0_i32_1 = arith.constant 0 : i32
    %c0_i32_2 = arith.constant 0 : i32
    return %c0_i32, %c0_i32_0, %c0_i32_1 : i32, i32, i32
  }
  func.func @transform_1(%arg0: i32) -> (i32, i32) {
    %c0_i32 = arith.constant 0 : i32
    %c0_i32_0 = arith.constant 0 : i32
    %c0_i32_1 = arith.constant 0 : i32
    return %c0_i32, %c0_i32_0 : i32, i32
  }
  func.func @transform_2(%arg0: i32) -> (i32, i32, i32) {
    %c0_i32 = arith.constant 0 : i32
    %c0_i32_0 = arith.constant 0 : i32
    %c0_i32_1 = arith.constant 0 : i32
    return %arg0, %c0_i32, %c0_i32_0 : i32, i32, i32
  }
  func.func @transform_3(%arg0: i32) -> (i32, i32, i32) {
    %c0_i32 = arith.constant 0 : i32
    %c0_i32_0 = arith.constant 0 : i32
    %c0_i32_1 = arith.constant 0 : i32
    return %arg0, %c0_i32, %c0_i32_0 : i32, i32, i32
  }
}

</mosaic_0001>

<llo_original>
// kernel: down_forward.1
$region0: #{down_forward.1}
  #allocation0 [shape = 'u32[]', space=smem, size = 0x4, offset = 0x4, fixed_abs, tag = 'smem constant byte address 0x4 - core index']
  #allocation1 [shape = 'u32[144,128]{1,0:T(1,128)}', space=vmem, size = 0x12000, scoped, tag = 'internal scratch']
  %s0 = inlined_call_operand.vmem [shape: f32[4,8,16], index: 0, kind: input, shape index: {}]
  %s1 = inlined_call_operand.vmem [shape: f32[8,1], index: 1, kind: input, shape index: {}]
  %s2 = inlined_call_operand.vmem [shape: f32[2,16,256], index: 2, kind: input, shape index: {}]
  %s3 = inlined_call_operand.vmem [shape: f32[2,8,128], index: 3, kind: output, shape index: {}]
  %s4 = sld [smem:[#allocation0]]
  $region45: #{down_forward.1} parent=0
    _
  %s6 = ssub.s32 1, %s4
  %s7 = scalar_select 0, %s6, %s4
  loop: start=0, step=1, limit=4
  $region2: #{down_forward.1} parent=0 // loop_pre_header
    _
  $region3: #{down_forward.1} parent=0 // loop_header
    %s9 = sphi 0, %s13
    %p10 = scmp.ge.s32.totalorder %s9, 4
    %s17 = sphi 0, %s17
    %s19 = sphi 0, %s17
    %s20 = sphi 0, %s19
    %s34 = sphi 0, %s20
    %s38 = sphi 0, %s38
    %s40 = sphi 0, %s38
    %s41 = sphi 0, %s40
    %s55 = sphi 0, %s41
    %s61 = sphi 0, %s63
    %s64 = sphi 0, %s61
    %s65 = sphi 0, %s64
    %s81 = sphi 0, %s65
    %s87 = sphi 0, %s89
    %s90 = sphi 0, %s87
    %s91 = sphi 0, %s90
    %s107 = sphi 0, %s91
  $region4: #{down_forward.1} parent=0 // loop_header_branch
    %12 = sbr.rel (%p10) target = $region8
  $region5: #{down_forward.1} parent=0 // loop_body
    %s14 = ssub.s32 %s9, 1
    %s15 = ssub.s32 %s9, 2
    %s16 = sadd.s32 %s9, 1
    %s18 = sadd.s32 %s17, 1
    %p21 = scmp.eq.s32.totalorder %s9, 1
    %p22 = scmp.ne.s32.totalorder %s17, %s19
    %p23 = scmp.eq.s32.totalorder %s9, 0
    %p24 = por %p22, %p23
    %p25 = scmp.ne.s32.totalorder %s17, %s19
    %p26 = scmp.eq.s32.totalorder %s14, 1
    %p27 = por %p25, %p26
    %p28 = scmp.ne.s32.totalorder %s19, %s20
    %p29 = scmp.eq.s32.totalorder %s14, 0
    %p30 = por %p28, %p29
    %p31 = scmp.ne.s32.totalorder %s19, %s20
    %p32 = scmp.eq.s32.totalorder %s15, 1
    %p33 = por %p31, %p32
    %p35 = scmp.ne.s32.totalorder %s20, %s34
    %p36 = scmp.eq.s32.totalorder %s15, 0
    %p37 = por %p35, %p36
    %s39 = sadd.s32 %s38, 1
    %p42 = scmp.eq.s32.totalorder %s9, 1
    %p43 = scmp.ne.s32.totalorder %s38, %s40
    %p44 = scmp.eq.s32.totalorder %s9, 0
    %p45 = por %p43, %p44
    %p46 = scmp.ne.s32.totalorder %s38, %s40
    %p47 = scmp.eq.s32.totalorder %s14, 1
    %p48 = por %p46, %p47
    %p49 = scmp.ne.s32.totalorder %s40, %s41
    %p50 = scmp.eq.s32.totalorder %s14, 0
    %p51 = por %p49, %p50
    %p52 = scmp.ne.s32.totalorder %s40, %s41
    %p53 = scmp.eq.s32.totalorder %s15, 1
    %p54 = por %p52, %p53
    %p56 = scmp.ne.s32.totalorder %s41, %s55
    %p57 = scmp.eq.s32.totalorder %s15, 0
    %p58 = por %p56, %p57
    %s59 = ssub.s32 %s9, %s16
    %p60 = scmp.eq.s32.totalorder %s59, 0
    %s62 = sadd.s32 %s61, 1
    %s63 = scalar_select %p60, %s61, %s62
    %p66 = pneg %p60
    %p67 = scmp.eq.s32.totalorder %s9, 1
    %p68 = por %p66, %p67
    %p69 = scmp.ne.s32.totalorder %s61, %s64
    %p70 = scmp.eq.s32.totalorder %s9, 0
    %p71 = por %p69, %p70
    %p72 = scmp.ne.s32.totalorder %s61, %s64
    %p73 = scmp.eq.s32.totalorder %s14, 1
    %p74 = por %p72, %p73
    %p75 = scmp.ne.s32.totalorder %s64, %s65
    %p76 = scmp.eq.s32.totalorder %s14, 0
    %p77 = por %p75, %p76
    %p78 = scmp.ne.s32.totalorder %s64, %s65
    %p79 = scmp.eq.s32.totalorder %s15, 1
    %p80 = por %p78, %p79
    %p82 = scmp.ne.s32.totalorder %s65, %s81
    %p83 = scmp.eq.s32.totalorder %s15, 0
    %p84 = por %p82, %p83
    %s85 = ssub.s32 %s9, %s16
    %p86 = scmp.eq.s32.totalorder %s85, 0
    %s88 = sadd.s32 %s87, 1
    %s89 = scalar_select %p86, %s87, %s88
    %p92 = pneg %p86
    %p93 = scmp.eq.s32.totalorder %s9, 1
    %p94 = por %p92, %p93
    %p95 = scmp.ne.s32.totalorder %s87, %s90
    %p96 = scmp.eq.s32.totalorder %s9, 0
    %p97 = por %p95, %p96
    %p98 = scmp.ne.s32.totalorder %s87, %s90
    %p99 = scmp.eq.s32.totalorder %s14, 1
    %p100 = por %p98, %p99
    %p101 = scmp.ne.s32.totalorder %s90, %s91
    %p102 = scmp.eq.s32.totalorder %s14, 0
    %p103 = por %p101, %p102
    %p104 = scmp.ne.s32.totalorder %s90, %s91
    %p105 = scmp.eq.s32.totalorder %s15, 1
    %p106 = por %p104, %p105
    %p108 = scmp.ne.s32.totalorder %s91, %s107
    %p109 = scmp.eq.s32.totalorder %s15, 0
    %p110 = por %p108, %p109
    %p111 = scmp.le.s32.totalorder 1, %s9
    %p112 = scmp.lt.s32.totalorder %s9, 3
    %p113 = pnand %p111, %p112
    %p114 = pneg %p113
    // Predicated region
    $region9: #{down_forward.1} parent=5 // pred_check
      _
    $region10: #{down_forward.1} parent=5 // pred_check_branch
      %116 = sbr.rel (%p113) target = $region12
    $region11: #{down_forward.1} parent=5 // pred_region
      %s117 = ssub.s32 %s9, 1
      // Predicated region
      $region13: #{down_forward.1} parent=11 // pred_check
        %p118 = pneg %p30
      $region14: #{down_forward.1} parent=11 // pred_check_branch
        %120 = sbr.rel (%p118) target = $region16
      $region15: #{down_forward.1} parent=11 // pred_region
        _
      $region16: #{down_forward.1} parent=11 // pred_fallthru
        _
      // Predicated region
      $region17: #{down_forward.1} parent=11 // pred_check
        %p121 = pneg %p51
      $region18: #{down_forward.1} parent=11 // pred_check_branch
        %123 = sbr.rel (%p121) target = $region20
      $region19: #{down_forward.1} parent=11 // pred_region
        _
      $region20: #{down_forward.1} parent=11 // pred_fallthru
        _
    $region12: #{down_forward.1} parent=5 // pred_fallthru
      _
    %p124 = scmp.lt.s32.totalorder %s9, 2
    // Predicated region
    $region21: #{down_forward.1} parent=5 // pred_check
      %p125 = pneg %p124
    $region22: #{down_forward.1} parent=5 // pred_check_branch
      %127 = sbr.rel (%p125) target = $region24
    $region23: #{down_forward.1} parent=5 // pred_region
      // Predicated region
      $region25: #{down_forward.1} parent=23 // pred_check
        %p128 = pneg %p71
      $region26: #{down_forward.1} parent=23 // pred_check_branch
        %130 = sbr.rel (%p128) target = $region28
      $region27: #{down_forward.1} parent=23 // pred_region
        %p131 = scmp.lt.s32.totalorder %s9, 1
        %s132 = scalar_select %p131, %s9, 1
        %s133 = smul.addr %s132, 4
        %s134 = smul.addr %s133, 8
        %s135 = scalar_lea.vmem %s2, %s134
      $region28: #{down_forward.1} parent=23 // pred_fallthru
        _
    $region24: #{down_forward.1} parent=5 // pred_fallthru
      _
    %p136 = scmp.le.s32.totalorder 1, %s9
    %p137 = scmp.lt.s32.totalorder %s9, 3
    %p138 = pnand %p136, %p137
    %p139 = pneg %p138
    // Predicated region
    $region29: #{down_forward.1} parent=5 // pred_check
      _
    $region30: #{down_forward.1} parent=5 // pred_check_branch
      %141 = sbr.rel (%p138) target = $region32
    $region31: #{down_forward.1} parent=5 // pred_region
      %s142 = ssub.s32 %s9, 1
      %p143 = pneg %p30
      %p144 = pneg %p27
      %p145 = pneg %p51
      %p146 = pneg %p48
      %p147 = scmp.lt.s32.totalorder %s14, 1
      %s148 = scalar_select %p147, %s14, 1
      %s149 = smul.addr %s148, 4
      %s150 = smul.addr %s149, 8
      %s151 = scalar_lea.vmem %s2, %s150
      %p152 = pneg %p77
      %p153 = pneg %p74
      %p154 = pneg %p103
      %p155 = pneg %p100
      %p156 = scmp.lt.s32.totalorder %s14, 1
      %s157 = scalar_select %p156, %s14, 1
      %s158 = smul.addr %s157, 8
      %s159 = scalar_lea.vmem %s3, %s158
      %p160 = scmp.lt.s32.totalorder %s14, 1
      %s161 = scalar_select %p160, %s14, 1
      %s162 = smul.addr %s161, 4
      %s163 = smul.addr %s162, 8
      %s164 = scalar_lea.vmem %s2, %s163
      %p165 = scmp.lt.s32.totalorder %s14, 1
      %s166 = scalar_select %p165, %s14, 1
      %s167 = smul.addr %s166, 8
      %s168 = scalar_lea.vmem %s3, %s167
      %v169 = vld [vmem:[%s0] sm:$0xff]
      %v170 = vld [vmem:[%s164] sm:$0xff]
      %v171 = vld [vmem:[%s164 + $0x10] sm:$0xff]
      %s172 = scalar_lea.vmem %s0, 8
      %v173 = vld [vmem:[%s172] sm:$0xff]
      %v174 = vld [vmem:[%s164] sm:$0xff]
      %v175 = vld [vmem:[%s164 + $0x8] sm:$0xff]
      %v176 = vld [vmem:[%s164 + $0x10] sm:$0xff]
      %v177 = vld [vmem:[%s164 + $0x18] sm:$0xff]
      %182 = vrot.lane.b32.xlu0 %v174, 127
      %v183 = vpop.permute.xlu0 %182
      %184 = vrot.lane.b32.xlu0 %v175, 127
      %v185 = vpop.permute.xlu0 %184
      %186 = vrot.lane.b32.xlu0 %v176, 127
      %v187 = vpop.permute.xlu0 %186
      %188 = vrot.lane.b32.xlu0 %v177, 127
      %v189 = vpop.permute.xlu0 %188
      %vm190 = vcmask 1039360
      %v191 = vsel %vm190, %v183, %v185
      %v192 = vsel %vm190, %v187, %v189
      %vm195 = vcmask 130048
      %v197 = vsel %vm195, %v173, 0
      %199 = vmatprep.subr.mxu0 0.0
      %200 = vmatpush1.msra.mxu0 %v191
      %201 = vmatprep.subr.mxu0 0.0
      %202 = vmatpush1.msra.mxu0 %v192
      %203 = vmatprep.subr.mxu0 0.0
      %204 = vmatpush1.msra.mxu0 0.0
      %205 = vmatprep.subr.mxu0 0.0
      %206 = vmatpush1.msra.mxu0 0.0
      %207 = vmatprep.subr.mxu0 0.0
      %208 = vmatpush1.msra.mxu0 0.0
      %209 = vmatprep.subr.mxu0 0.0
      %210 = vmatpush1.msra.mxu0 0.0
      %211 = vmatprep.subr.mxu0 0.0
      %212 = vmatpush1.msra.mxu0 0.0
      %213 = vmatprep.subr.mxu0 0.0
      %214 = vmatpush1.msra.mxu0 0.0
      %215 = vmatprep.subr.mxu0 0.0
      %216 = vmatpush1.msra.mxu0 0.0
      %217 = vmatprep.subr.mxu0 0.0
      %218 = vmatpush1.msra.mxu0 0.0
      %219 = vmatprep.subr.mxu0 0.0
      %220 = vmatpush1.msra.mxu0 0.0
      %221 = vmatprep.subr.mxu0 0.0
      %222 = vmatpush1.msra.mxu0 0.0
      %223 = vmatprep.subr.mxu0 0.0
      %224 = vmatpush1.msra.mxu0 0.0
      %225 = vmatprep.subr.mxu0 0.0
      %226 = vmatpush1.msra.mxu0 0.0
      %227 = vmatprep.subr.mxu0 0.0
      %228 = vmatpush1.msra.mxu0 0.0
      %229 = vmatprep.subr.mxu0 0.0
      %230 = vmatpush1.msra.mxu0 0.0
      %231 = vmatprep.subr.mxu0 0.0
      %232 = vmatpush1.msra.mxu0 0.0
      %233 = vmatprep.subr.mxu0 0.0
      %234 = vmatpush1.msra.mxu0 0.0
      %235 = vmatprep.subr.mxu0 0.0
      %236 = vmatpush1.msra.mxu0 0.0
      %237 = vmatprep.subr.mxu0 0.0
      %238 = vmatpush1.msra.mxu0 0.0
      %239 = vmatprep.subr.mxu0 0.0
      %240 = vmatpush1.msra.mxu0 0.0
      %241 = vmatprep.subr.mxu0 0.0
      %242 = vmatpush1.msra.mxu0 0.0
      %243 = vmatprep.subr.mxu0 0.0
      %244 = vmatpush1.msra.mxu0 0.0
      %245 = vmatprep.subr.mxu0 0.0
      %246 = vmatpush1.msra.mxu0 0.0
      %247 = vmatprep.subr.mxu0 0.0
      %248 = vmatpush1.msra.mxu0 0.0
      %249 = vmatprep.subr.mxu0 0.0
      %250 = vmatpush1.msra.mxu0 0.0
      %251 = vmatprep.subr.mxu0 0.0
      %252 = vmatpush1.msra.mxu0 0.0
      %253 = vmatprep.subr.mxu0 0.0
      %254 = vmatpush1.msra.mxu0 0.0
      %255 = vmatprep.subr.mxu0 0.0
      %256 = vmatpush1.msra.mxu0 0.0
      %257 = vmatprep.subr.mxu0 0.0
      %258 = vmatpush1.msra.mxu0 0.0
      %259 = vmatprep.subr.mxu0 0.0
      %260 = vmatpush1.msra.mxu0 0.0
      %261 = vmatprep.subr.mxu0 0.0
      %262 = vmatpush1.msra.mxu0 0.0
      %263 = vmatprep.mubr.f32.mxu0 0.0
      %264 = vmatmul.mubr.f32.gmra.mrb[0].mxu0 %v197
      %v265 = vpop.f32.mrb[0].mxu0
      %v266 = vadd.f32 0.0, %v265
      %v267 = vpop.f32.mrb[0].mxu0
      %268 = vdwg.mxu0
      %v270 = vsel %vm195, %v169, 0
      %272 = vmatprep.subr.mxu0 0.0
      %273 = vmatpush1.msra.mxu0 %v170
      %274 = vmatprep.subr.mxu0 0.0
      %275 = vmatpush1.msra.mxu0 %v171
      %276 = vmatprep.subr.mxu0 0.0
      %277 = vmatpush1.msra.mxu0 0.0
      %278 = vmatprep.subr.mxu0 0.0
      %279 = vmatpush1.msra.mxu0 0.0
      %280 = vmatprep.subr.mxu0 0.0
      %281 = vmatpush1.msra.mxu0 0.0
      %282 = vmatprep.subr.mxu0 0.0
      %283 = vmatpush1.msra.mxu0 0.0
      %284 = vmatprep.subr.mxu0 0.0
      %285 = vmatpush1.msra.mxu0 0.0
      %286 = vmatprep.subr.mxu0 0.0
      %287 = vmatpush1.msra.mxu0 0.0
      %288 = vmatprep.subr.mxu0 0.0
      %289 = vmatpush1.msra.mxu0 0.0
      %290 = vmatprep.subr.mxu0 0.0
      %291 = vmatpush1.msra.mxu0 0.0
      %292 = vmatprep.subr.mxu0 0.0
      %293 = vmatpush1.msra.mxu0 0.0
      %294 = vmatprep.subr.mxu0 0.0
      %295 = vmatpush1.msra.mxu0 0.0
      %296 = vmatprep.subr.mxu0 0.0
      %297 = vmatpush1.msra.mxu0 0.0
      %298 = vmatprep.subr.mxu0 0.0
      %299 = vmatpush1.msra.mxu0 0.0
      %300 = vmatprep.subr.mxu0 0.0
      %301 = vmatpush1.msra.mxu0 0.0
      %302 = vmatprep.subr.mxu0 0.0
      %303 = vmatpush1.msra.mxu0 0.0
      %304 = vmatprep.subr.mxu0 0.0
      %305 = vmatpush1.msra.mxu0 0.0
      %306 = vmatprep.subr.mxu0 0.0
      %307 = vmatpush1.msra.mxu0 0.0
      %308 = vmatprep.subr.mxu0 0.0
      %309 = vmatpush1.msra.mxu0 0.0
      %310 = vmatprep.subr.mxu0 0.0
      %311 = vmatpush1.msra.mxu0 0.0
      %312 = vmatprep.subr.mxu0 0.0
      %313 = vmatpush1.msra.mxu0 0.0
      %314 = vmatprep.subr.mxu0 0.0
      %315 = vmatpush1.msra.mxu0 0.0
      %316 = vmatprep.subr.mxu0 0.0
      %317 = vmatpush1.msra.mxu0 0.0
      %318 = vmatprep.subr.mxu0 0.0
      %319 = vmatpush1.msra.mxu0 0.0
      %320 = vmatprep.subr.mxu0 0.0
      %321 = vmatpush1.msra.mxu0 0.0
      %322 = vmatprep.subr.mxu0 0.0
      %323 = vmatpush1.msra.mxu0 0.0
      %324 = vmatprep.subr.mxu0 0.0
      %325 = vmatpush1.msra.mxu0 0.0
      %326 = vmatprep.subr.mxu0 0.0
      %327 = vmatpush1.msra.mxu0 0.0
      %328 = vmatprep.subr.mxu0 0.0
      %329 = vmatpush1.msra.mxu0 0.0
      %330 = vmatprep.subr.mxu0 0.0
      %331 = vmatpush1.msra.mxu0 0.0
      %332 = vmatprep.subr.mxu0 0.0
      %333 = vmatpush1.msra.mxu0 0.0
      %334 = vmatprep.subr.mxu0 0.0
      %335 = vmatpush1.msra.mxu0 0.0
      %336 = vmatprep.mubr.f32.mxu0 0.0
      %337 = vmatmul.mubr.f32.gmra.mrb[0].mxu0 %v270
      %v338 = vpop.f32.mrb[0].mxu0
      %v339 = vadd.f32 %v266, %v338
      %v340 = vpop.f32.mrb[0].mxu0
      %341 = vdwg.mxu0
      %s342 = scalar_lea.vmem %s0, 16
      %v343 = vld [vmem:[%s342] sm:$0xff]
      %344 = vrot.lane.b32.xlu0 %v174, 119
      %v345 = vpop.permute.xlu0 %344
      %346 = vrot.lane.b32.xlu0 %v175, 119
      %v347 = vpop.permute.xlu0 %346
      %348 = vrot.lane.b32.xlu0 %v176, 119
      %v349 = vpop.permute.xlu0 %348
      %350 = vrot.lane.b32.xlu0 %v177, 119
      %v351 = vpop.permute.xlu0 %350
      %vm352 = vcmask 973824
      %v353 = vsel %vm352, %v345, %v347
      %v354 = vsel %vm352, %v349, %v351
      %v358 = vsel %vm195, %v343, 0
      %360 = vmatprep.subr.mxu0 0.0
      %361 = vmatpush1.msra.mxu0 %v353
      %362 = vmatprep.subr.mxu0 0.0
      %363 = vmatpush1.msra.mxu0 %v354
      %364 = vmatprep.subr.mxu0 0.0
      %365 = vmatpush1.msra.mxu0 0.0
      %366 = vmatprep.subr.mxu0 0.0
      %367 = vmatpush1.msra.mxu0 0.0
      %368 = vmatprep.subr.mxu0 0.0
      %369 = vmatpush1.msra.mxu0 0.0
      %370 = vmatprep.subr.mxu0 0.0
      %371 = vmatpush1.msra.mxu0 0.0
      %372 = vmatprep.subr.mxu0 0.0
      %373 = vmatpush1.msra.mxu0 0.0
      %374 = vmatprep.subr.mxu0 0.0
      %375 = vmatpush1.msra.mxu0 0.0
      %376 = vmatprep.subr.mxu0 0.0
      %377 = vmatpush1.msra.mxu0 0.0
      %378 = vmatprep.subr.mxu0 0.0
      %379 = vmatpush1.msra.mxu0 0.0
      %380 = vmatprep.subr.mxu0 0.0
      %381 = vmatpush1.msra.mxu0 0.0
      %382 = vmatprep.subr.mxu0 0.0
      %383 = vmatpush1.msra.mxu0 0.0
      %384 = vmatprep.subr.mxu0 0.0
      %385 = vmatpush1.msra.mxu0 0.0
      %386 = vmatprep.subr.mxu0 0.0
      %387 = vmatpush1.msra.mxu0 0.0
      %388 = vmatprep.subr.mxu0 0.0
      %389 = vmatpush1.msra.mxu0 0.0
      %390 = vmatprep.subr.mxu0 0.0
      %391 = vmatpush1.msra.mxu0 0.0
      %392 = vmatprep.subr.mxu0 0.0
      %393 = vmatpush1.msra.mxu0 0.0
      %394 = vmatprep.subr.mxu0 0.0
      %395 = vmatpush1.msra.mxu0 0.0
      %396 = vmatprep.subr.mxu0 0.0
      %397 = vmatpush1.msra.mxu0 0.0
      %398 = vmatprep.subr.mxu0 0.0
      %399 = vmatpush1.msra.mxu0 0.0
      %400 = vmatprep.subr.mxu0 0.0
      %401 = vmatpush1.msra.mxu0 0.0
      %402 = vmatprep.subr.mxu0 0.0
      %403 = vmatpush1.msra.mxu0 0.0
      %404 = vmatprep.subr.mxu0 0.0
      %405 = vmatpush1.msra.mxu0 0.0
      %406 = vmatprep.subr.mxu0 0.0
      %407 = vmatpush1.msra.mxu0 0.0
      %408 = vmatprep.subr.mxu0 0.0
      %409 = vmatpush1.msra.mxu0 0.0
      %410 = vmatprep.subr.mxu0 0.0
      %411 = vmatpush1.msra.mxu0 0.0
      %412 = vmatprep.subr.mxu0 0.0
      %413 = vmatpush1.msra.mxu0 0.0
      %414 = vmatprep.subr.mxu0 0.0
      %415 = vmatpush1.msra.mxu0 0.0
      %416 = vmatprep.subr.mxu0 0.0
      %417 = vmatpush1.msra.mxu0 0.0
      %418 = vmatprep.subr.mxu0 0.0
      %419 = vmatpush1.msra.mxu0 0.0
      %420 = vmatprep.subr.mxu0 0.0
      %421 = vmatpush1.msra.mxu0 0.0
      %422 = vmatprep.subr.mxu0 0.0
      %423 = vmatpush1.msra.mxu0 0.0
      %424 = vmatprep.mubr.f32.mxu0 0.0
      %425 = vmatmul.mubr.f32.gmra.mrb[0].mxu0 %v358
      %v426 = vpop.f32.mrb[0].mxu0
      %v427 = vadd.f32 0.0, %v426
      %v428 = vpop.f32.mrb[0].mxu0
      %429 = vdwg.mxu0
      %v430 = vadd.f32 %v339, %v427
      %s431 = scalar_lea.vmem %s0, 24
      %v432 = vld [vmem:[%s431] sm:$0xff]
      %433 = vrot.lane.b32.xlu0 %v174, 118
      %v434 = vpop.permute.xlu0 %433
      %435 = vrot.lane.b32.xlu0 %v175, 118
      %v436 = vpop.permute.xlu0 %435
      %437 = vrot.lane.b32.xlu0 %v176, 118
      %v438 = vpop.permute.xlu0 %437
      %439 = vrot.lane.b32.xlu0 %v177, 118
      %v440 = vpop.permute.xlu0 %439
      %vm441 = vcmask 965632
      %v442 = vsel %vm441, %v434, %v436
      %v443 = vsel %vm441, %v438, %v440
      %v447 = vsel %vm195, %v432, 0
      %449 = vmatprep.subr.mxu0 0.0
      %450 = vmatpush1.msra.mxu0 %v442
      %451 = vmatprep.subr.mxu0 0.0
      %452 = vmatpush1.msra.mxu0 %v443
      %453 = vmatprep.subr.mxu0 0.0
      %454 = vmatpush1.msra.mxu0 0.0
      %455 = vmatprep.subr.mxu0 0.0
      %456 = vmatpush1.msra.mxu0 0.0
      %457 = vmatprep.subr.mxu0 0.0
      %458 = vmatpush1.msra.mxu0 0.0
      %459 = vmatprep.subr.mxu0 0.0
      %460 = vmatpush1.msra.mxu0 0.0
      %461 = vmatprep.subr.mxu0 0.0
      %462 = vmatpush1.msra.mxu0 0.0
      %463 = vmatprep.subr.mxu0 0.0
      %464 = vmatpush1.msra.mxu0 0.0
      %465 = vmatprep.subr.mxu0 0.0
      %466 = vmatpush1.msra.mxu0 0.0
      %467 = vmatprep.subr.mxu0 0.0
      %468 = vmatpush1.msra.mxu0 0.0
      %469 = vmatprep.subr.mxu0 0.0
      %470 = vmatpush1.msra.mxu0 0.0
      %471 = vmatprep.subr.mxu0 0.0
      %472 = vmatpush1.msra.mxu0 0.0
      %473 = vmatprep.subr.mxu0 0.0
      %474 = vmatpush1.msra.mxu0 0.0
      %475 = vmatprep.subr.mxu0 0.0
      %476 = vmatpush1.msra.mxu0 0.0
      %477 = vmatprep.subr.mxu0 0.0
      %478 = vmatpush1.msra.mxu0 0.0
      %479 = vmatprep.subr.mxu0 0.0
      %480 = vmatpush1.msra.mxu0 0.0
      %481 = vmatprep.subr.mxu0 0.0
      %482 = vmatpush1.msra.mxu0 0.0
      %483 = vmatprep.subr.mxu0 0.0
      %484 = vmatpush1.msra.mxu0 0.0
      %485 = vmatprep.subr.mxu0 0.0
      %486 = vmatpush1.msra.mxu0 0.0
      %487 = vmatprep.subr.mxu0 0.0
      %488 = vmatpush1.msra.mxu0 0.0
      %489 = vmatprep.subr.mxu0 0.0
      %490 = vmatpush1.msra.mxu0 0.0
      %491 = vmatprep.subr.mxu0 0.0
      %492 = vmatpush1.msra.mxu0 0.0
      %493 = vmatprep.subr.mxu0 0.0
      %494 = vmatpush1.msra.mxu0 0.0
      %495 = vmatprep.subr.mxu0 0.0
      %496 = vmatpush1.msra.mxu0 0.0
      %497 = vmatprep.subr.mxu0 0.0
      %498 = vmatpush1.msra.mxu0 0.0
      %499 = vmatprep.subr.mxu0 0.0
      %500 = vmatpush1.msra.mxu0 0.0
      %501 = vmatprep.subr.mxu0 0.0
      %502 = vmatpush1.msra.mxu0 0.0
      %503 = vmatprep.subr.mxu0 0.0
      %504 = vmatpush1.msra.mxu0 0.0
      %505 = vmatprep.subr.mxu0 0.0
      %506 = vmatpush1.msra.mxu0 0.0
      %507 = vmatprep.subr.mxu0 0.0
      %508 = vmatpush1.msra.mxu0 0.0
      %509 = vmatprep.subr.mxu0 0.0
      %510 = vmatpush1.msra.mxu0 0.0
      %511 = vmatprep.subr.mxu0 0.0
      %512 = vmatpush1.msra.mxu0 0.0
      %513 = vmatprep.mubr.f32.mxu0 0.0
      %514 = vmatmul.mubr.f32.gmra.mrb[0].mxu0 %v447
      %v515 = vpop.f32.mrb[0].mxu0
      %v516 = vadd.f32 0.0, %v515
      %v517 = vpop.f32.mrb[0].mxu0
      %518 = vdwg.mxu0
      %v519 = vadd.f32 %v430, %v516
      %v520 = vld [vmem:[%s1] sm:$0xff]
      %522 = vset.pattern.permute.xlu0 0
      %523 = vperm.xlu0 %522, %v520
      %v524 = vpop.permute.xlu0 %523
      %v526 = vadd.f32 %v519, %v524
      %vm527 = vcmp.ge.f32.partialorder %v526, 0.0
      %v528 = vmul.f32 %v526, 0.2
      %v529 = vsel %vm527, %v526, %v528
      %530 = vst [vmem:[%s168] sm:$0xff] %v529
      %p531 = scmp.lt.s32.totalorder %s14, 1
      %s532 = scalar_select %p531, %s14, 1
      %s533 = smul.addr %s532, 8
      %s534 = scalar_lea.vmem %s3, %s533
      // Predicated region
      $region33: #{down_forward.1} parent=31 // pred_check
        %p535 = pneg %p100
      $region34: #{down_forward.1} parent=31 // pred_check_branch
        %537 = sbr.rel (%p535) target = $region36
      $region35: #{down_forward.1} parent=31 // pred_region
        _
      $region36: #{down_forward.1} parent=31 // pred_fallthru
        _
    $region32: #{down_forward.1} parent=5 // pred_fallthru
      _
    %p538 = scmp.le.s32.totalorder 2, %s9
    // Predicated region
    $region37: #{down_forward.1} parent=5 // pred_check
      %p539 = pneg %p538
    $region38: #{down_forward.1} parent=5 // pred_check_branch
      %541 = sbr.rel (%p539) target = $region40
    $region39: #{down_forward.1} parent=5 // pred_region
      %s542 = ssub.s32 %s9, 2
      // Predicated region
      $region41: #{down_forward.1} parent=39 // pred_check
        %p543 = pneg %p106
      $region42: #{down_forward.1} parent=39 // pred_check_branch
        %545 = sbr.rel (%p543) target = $region44
      $region43: #{down_forward.1} parent=39 // pred_region
        %p546 = scmp.lt.s32.totalorder %s15, 1
        %s547 = scalar_select %p546, %s15, 1
        %s548 = smul.addr %s547, 8
        %s549 = scalar_lea.vmem %s3, %s548
      $region44: #{down_forward.1} parent=39 // pred_fallthru
        _
    $region40: #{down_forward.1} parent=5 // pred_fallthru
      _
  $region6: #{down_forward.1} parent=0 // loop_footer
    %s13 = sadd.s32 1, %s9
  $region7: #{down_forward.1} parent=0 // loop_footer_branch
    %8 = sbr.rel target = $region3
  $region8: #{down_forward.1} parent=0 // loop_exit
    _

</llo_original>
